<compile_context>
chip_gen: v7x
topology: tpu7x:2x2x1
jax: 0.10.0
libtpu: 0.0.40
codegen_flags: <defaults>
</compile_context>

<pallas_src>
import functools

import jax
import jax.numpy as jnp
from jax import lax
from jax.experimental import pallas as pl
from jax.experimental.pallas import tpu as pltpu


# ----------------------------------------------------------------------------
# Fused kernel: merge(fc1) -> x @ W1.T + b1 -> ReLU -> merge(fc2) -> @ W2.T
# Grid: (batch blocks [parallel], intermediate blocks [arbitrary/reduction]).
# ----------------------------------------------------------------------------
def _fused_merge_mlp_kernel(alphas_ref,            # (K,) f32 in SMEM
                            x_ref,                 # (tm, H)
                            w1p_ref, w1t_ref,      # (tn, H), (K, tn, H)
                            b1p_ref, b1t_ref,      # (1, tn), (K, 1, tn)
                            w2p_ref, w2t_ref,      # (Lp, tn), (K, Lp, tn)
                            b2p_ref, b2t_ref,      # (1, Lp), (K, 1, Lp)
                            out_ref,               # (tm, Lp)
                            acc_ref,               # scratch (tm, Lp) f32
                            *, k_models):
    j = pl.program_id(1)

    @pl.when(j == 0)
    def _():
        acc_ref[...] = jnp.zeros_like(acc_ref)

    # Taskwise merge coefficients (scalar reads from SMEM, computed once):
    #   merged = (1 - sum_k alpha_k) * pre + sum_k alpha_k * task_k
    a_sum = alphas_ref[0]
    for k in range(1, k_models):
        a_sum = a_sum + alphas_ref[k]
    base = 1.0 - a_sum

    def merge(pre_ref, task_ref):
        m = base * pre_ref[...]
        for k in range(k_models):                  # K is small & static
            m = m + alphas_ref[k] * task_ref[k]
        return m                                   # f32

    # ---- fc1 (merged) + bias + ReLU for this intermediate tile -------------
    w1 = merge(w1p_ref, w1t_ref)                   # (tn, H), [out, in] layout
    b1 = merge(b1p_ref, b1t_ref)                   # (1, tn)
    h = lax.dot_general(                           # x @ W1.T, no transpose pass
        x_ref[...].astype(jnp.bfloat16), w1.astype(jnp.bfloat16),
        dimension_numbers=(((1,), (1,)), ((), ())),
        preferred_element_type=jnp.float32)
    h = jnp.maximum(h + b1, 0.0)                   # (tm, tn) f32

    # ---- fc2 (merged): partial contraction over this intermediate tile -----
    w2 = merge(w2p_ref, w2t_ref)                   # (Lp, tn)
    acc_ref[...] += lax.dot_general(
        h.astype(jnp.bfloat16), w2.astype(jnp.bfloat16),
        dimension_numbers=(((1,), (1,)), ((), ())),
        preferred_element_type=jnp.float32)

    @pl.when(j == pl.num_programs(1) - 1)
    def _():
        b2 = merge(b2p_ref, b2t_ref)               # (1, Lp)
        out_ref[...] = (acc_ref[...] + b2).astype(out_ref.dtype)


# ----------------------------------------------------------------------------
# One-time parameter prep (runs once at model build, NOT per forward):
# stacks task params, lifts biases to 2-D, pads fc2 to a lane-dense 128 slab.
# ----------------------------------------------------------------------------
def prepare_merged_inputs(pretrained_params, task_params_list):
    k_models = len(task_params_list)
    inter, hidden = pretrained_params["fc1.weight"].shape
    labels = pretrained_params["fc2.weight"].shape[0]
    lp = max(128, ((labels + 127) // 128) * 128)   # lane-dense output width

    def stack(name):
        return jnp.stack([task_params_list[k][name] for k in range(k_models)], 0)

    def pad_w2(w):                                  # (L, I) -> (Lp, I)
        return jnp.pad(w, ((0, lp - labels), (0, 0)))

    def pad_b2(b):                                  # (L,) -> (1, Lp)
        return jnp.pad(b, (0, lp - labels)).reshape(1, lp)

    return {
        "w1_pre": pretrained_params["fc1.weight"],                     # (I, H)
        "w1_tasks": stack("fc1.weight"),                               # (K, I, H)
        "b1_pre": pretrained_params["fc1.bias"].reshape(1, inter),     # (1, I)
        "b1_tasks": stack("fc1.bias").reshape(k_models, 1, inter),     # (K, 1, I)
        "w2_pre": pad_w2(pretrained_params["fc2.weight"]),             # (Lp, I)
        "w2_tasks": jnp.stack(
            [pad_w2(task_params_list[k]["fc2.weight"]) for k in range(k_models)], 0),
        "b2_pre": pad_b2(pretrained_params["fc2.bias"]),               # (1, Lp)
        "b2_tasks": jnp.stack(
            [pad_b2(task_params_list[k]["fc2.bias"]) for k in range(k_models)], 0),
        "num_labels": labels,
        "k_models": k_models,
    }


# ----------------------------------------------------------------------------
# Forward of the merged model: single fused pallas_call.
# ----------------------------------------------------------------------------
def merged_model_forward(x, prepared, alphas):
    k_models = prepared["k_models"]
    inter, hidden = prepared["w1_pre"].shape
    lp = prepared["w2_pre"].shape[0]

    # Pad batch to a sublane multiple (8).
    b_in = x.shape[0]
    b_pad = ((b_in + 7) // 8) * 8
    if b_pad != b_in:
        x = jnp.pad(x, ((0, b_pad - b_in), (0, 0)))

    tm = 128 if (b_pad % 128 == 0) else b_pad       # tiny batches: one row block
    tn = 128 if (inter % 128 == 0) else inter       # lane-dense intermediate tile
    assert inter % tn == 0 and b_pad % tm == 0
    grid = (b_pad // tm, inter // tn)

    kernel = functools.partial(_fused_merge_mlp_kernel, k_models=k_models)

    out = pl.pallas_call(
        kernel,
        out_shape=jax.ShapeDtypeStruct((b_pad, lp), jnp.float32),
        grid_spec=pltpu.PrefetchScalarGridSpec(
            num_scalar_prefetch=0,
            grid=grid,
            in_specs=[
                pl.BlockSpec(memory_space=pltpu.MemorySpace.SMEM),      # alphas
                pl.BlockSpec((tm, hidden), lambda i, j: (i, 0)),        # x
                pl.BlockSpec((tn, hidden), lambda i, j: (j, 0)),        # w1 pre
                pl.BlockSpec((k_models, tn, hidden),
                             lambda i, j: (0, j, 0)),                   # w1 tasks
                pl.BlockSpec((1, tn), lambda i, j: (0, j)),             # b1 pre
                pl.BlockSpec((k_models, 1, tn), lambda i, j: (0, 0, j)),# b1 tasks
                pl.BlockSpec((lp, tn), lambda i, j: (0, j)),            # w2 pre
                pl.BlockSpec((k_models, lp, tn),
                             lambda i, j: (0, 0, j)),                   # w2 tasks
                pl.BlockSpec((1, lp), lambda i, j: (0, 0)),             # b2 pre
                pl.BlockSpec((k_models, 1, lp), lambda i, j: (0, 0, 0)),# b2 tasks
            ],
            out_specs=pl.BlockSpec((tm, lp), lambda i, j: (i, 0)),
            scratch_shapes=[pltpu.VMEM((tm, lp), jnp.float32)],
        ),
        compiler_params=pltpu.CompilerParams(
            dimension_semantics=("parallel", "arbitrary")),
    )(alphas, x,
      prepared["w1_pre"], prepared["w1_tasks"],
      prepared["b1_pre"], prepared["b1_tasks"],
      prepared["w2_pre"], prepared["w2_tasks"],
      prepared["b2_pre"], prepared["b2_tasks"])

    return out[:b_in, :prepared["num_labels"]]


# ----------------------------------------------------------------------------
# Pure-JAX f32 reference (matches the PyTorch module's math).
# ----------------------------------------------------------------------------
def reference_forward(x, pretrained_params, task_params_list, alphas):
    merged = {}
    for name, pre in pretrained_params.items():
        p = pre
        for k in range(len(task_params_list)):
            p = p + alphas[k] * (task_params_list[k][name] - pre)
        merged[name] = p
    h = jnp.maximum(x @ merged["fc1.weight"].T + merged["fc1.bias"], 0.0)
    return h @ merged["fc2.weight"].T + merged["fc2.bias"]


if __name__ == "__main__":
    batch, hidden, intermediate, num_labels = 8, 128, 256, 4
    n_task_models = 2

    key = jax.random.PRNGKey(0)
    keys = jax.random.split(key, 16)

    def make_params(k0, k1, k2, k3):
        return {
            "fc1.weight": jax.random.normal(k0, (intermediate, hidden), jnp.float32) * 0.05,
            "fc1.bias": jax.random.normal(k1, (intermediate,), jnp.float32) * 0.05,
            "fc2.weight": jax.random.normal(k2, (num_labels, intermediate), jnp.float32) * 0.05,
            "fc2.bias": jax.random.normal(k3, (num_labels,), jnp.float32) * 0.05,
        }

    pretrained_params = make_params(*keys[0:4])
    task_params_list = [make_params(*keys[4:8]), make_params(*keys[8:12])]

    # taskwise granularity: one alpha per task model, initialized to 0.3.
    alphas = jnp.full((n_task_models,), 0.3, dtype=jnp.float32)
    x = jax.random.normal(keys[12], (batch, hidden), jnp.float32)

    # One-time prep (stack task params, pad fc2 to lane-dense width).
    prepared = prepare_merged_inputs(pretrained_params, task_params_list)

    out = merged_model_forward(x, prepared, alphas)
    out = jax.block_until_ready(out)

    ref = reference_forward(x, pretrained_params, task_params_list, alphas)
    assert out.shape == (batch, num_labels)
    # bf16 MXU operands (f32 merge + accumulate) -> tolerance sized for bf16.
    assert jnp.allclose(out, ref, atol=3e-2, rtol=3e-2), "mismatch vs reference"

    print("KERNEL_OK")
</pallas_src>

<mosaic_0001>
module attributes {stable_mosaic.version = 11 : i64} {
  func.func @_fused_merge_mlp_kernel(%arg0: i32, %arg1: i32, %arg2: memref<2xf32, #tpu.memory_space<smem>>, %arg3: memref<8x128xf32, #tpu.memory_space<vmem>>, %arg4: memref<128x128xf32, #tpu.memory_space<vmem>>, %arg5: memref<2x128x128xf32, #tpu.memory_space<vmem>>, %arg6: memref<1x128xf32, #tpu.memory_space<vmem>>, %arg7: memref<2x1x128xf32, #tpu.memory_space<vmem>>, %arg8: memref<128x128xf32, #tpu.memory_space<vmem>>, %arg9: memref<2x128x128xf32, #tpu.memory_space<vmem>>, %arg10: memref<1x128xf32, #tpu.memory_space<vmem>>, %arg11: memref<2x1x128xf32, #tpu.memory_space<vmem>>, %arg12: memref<8x128xf32, #tpu.memory_space<vmem>>, %arg13: memref<8x128xf32, #tpu.memory_space<vmem>>) attributes {dimension_semantics = [#tpu.dimension_semantics<parallel>, #tpu.dimension_semantics<arbitrary>], iteration_bounds = array<i64: 1, 2>, scalar_prefetch = 0 : i64, scratch_operands = 1 : i64, tpu.core_type = #tpu.core_type<tc>, window_params = [{transform_indices = @transform_0, window_bounds = array<i64: 2>}, {transform_indices = @transform_1, window_bounds = array<i64: 8, 128>}, {transform_indices = @transform_2, window_bounds = array<i64: 128, 128>}, {transform_indices = @transform_3, window_bounds = array<i64: 2, 128, 128>}, {transform_indices = @transform_4, window_bounds = array<i64: 1, 128>}, {transform_indices = @transform_5, window_bounds = array<i64: 2, 1, 128>}, {transform_indices = @transform_6, window_bounds = array<i64: 128, 128>}, {transform_indices = @transform_7, window_bounds = array<i64: 2, 128, 128>}, {pipeline_mode = #tpu.pipeline_mode<synchronous>, transform_indices = @transform_8, window_bounds = array<i64: 1, 128>}, {pipeline_mode = #tpu.pipeline_mode<synchronous>, transform_indices = @transform_9, window_bounds = array<i64: 2, 1, 128>}, {transform_indices = @transform_10, window_bounds = array<i64: 8, 128>}]} {
    %c0_i32 = arith.constant 0 : i32
    %0 = arith.cmpi eq, %arg1, %c0_i32 : i32
    %1 = arith.extui %0 : i1 to i32
    %c0_i32_0 = arith.constant 0 : i32
    %2 = arith.cmpi ne, %1, %c0_i32_0 : i32
    scf.if %2 {
      %cst_41 = arith.constant 0.000000e+00 : f32
      %69 = vector.broadcast %cst_41 : f32 to vector<8x128xf32>
      %c0_42 = arith.constant 0 : index
      %c0_43 = arith.constant 0 : index
      %70 = vector.load %arg13[%c0_42, %c0_43] : memref<8x128xf32, #tpu.memory_space<vmem>>, vector<8x128xf32>
      tpu.vector_store %arg13[%c0_42, %c0_43], %69 {strides = array<i32>} : memref<8x128xf32, #tpu.memory_space<vmem>>, vector<8x128xf32>,
    } else {
    }
    %c0 = arith.constant 0 : index
    %3 = memref.load %arg2[%c0] : memref<2xf32, #tpu.memory_space<smem>>
    %c1 = arith.constant 1 : index
    %4 = memref.load %arg2[%c1] : memref<2xf32, #tpu.memory_space<smem>>
    %5 = arith.addf %3, %4 : f32
    %cst = arith.constant 1.000000e+00 : f32
    %6 = arith.subf %cst, %5 : f32
    %c0_1 = arith.constant 0 : index
    %c0_2 = arith.constant 0 : index
    %7 = vector.load %arg4[%c0_1, %c0_2] : memref<128x128xf32, #tpu.memory_space<vmem>>, vector<128x128xf32>
    %8 = vector.broadcast %6 : f32 to vector<128x128xf32>
    %9 = arith.mulf %8, %7 : vector<128x128xf32>
    %c0_3 = arith.constant 0 : index
    %10 = memref.load %arg2[%c0_3] : memref<2xf32, #tpu.memory_space<smem>>
    %c0_4 = arith.constant 0 : index
    %c0_5 = arith.constant 0 : index
    %c0_6 = arith.constant 0 : index
    %11 = vector.load %arg5[%c0_4, %c0_5, %c0_6] : memref<2x128x128xf32, #tpu.memory_space<vmem>>, vector<1x128x128xf32>
    %12 = vector.shape_cast %11 : vector<1x128x128xf32> to vector<128x128xf32>
    %13 = vector.broadcast %10 : f32 to vector<128x128xf32>
    %14 = arith.mulf %13, %12 : vector<128x128xf32>
    %15 = arith.addf %9, %14 : vector<128x128xf32>
    %c1_7 = arith.constant 1 : index
    %16 = memref.load %arg2[%c1_7] : memref<2xf32, #tpu.memory_space<smem>>
    %c1_8 = arith.constant 1 : index
    %c0_9 = arith.constant 0 : index
    %c0_10 = arith.constant 0 : index
    %17 = vector.load %arg5[%c1_8, %c0_9, %c0_10] : memref<2x128x128xf32, #tpu.memory_space<vmem>>, vector<1x128x128xf32>
    %18 = vector.shape_cast %17 : vector<1x128x128xf32> to vector<128x128xf32>
    %19 = vector.broadcast %16 : f32 to vector<128x128xf32>
    %20 = arith.mulf %19, %18 : vector<128x128xf32>
    %21 = arith.addf %15, %20 : vector<128x128xf32>
    %c0_11 = arith.constant 0 : index
    %c0_12 = arith.constant 0 : index
    %22 = vector.load %arg6[%c0_11, %c0_12] : memref<1x128xf32, #tpu.memory_space<vmem>>, vector<1x128xf32>
    %23 = vector.broadcast %6 : f32 to vector<1x128xf32>
    %24 = arith.mulf %23, %22 : vector<1x128xf32>
    %c0_13 = arith.constant 0 : index
    %25 = memref.load %arg2[%c0_13] : memref<2xf32, #tpu.memory_space<smem>>
    %c0_14 = arith.constant 0 : index
    %c0_15 = arith.constant 0 : index
    %c0_16 = arith.constant 0 : index
    %26 = vector.load %arg7[%c0_14, %c0_15, %c0_16] : memref<2x1x128xf32, #tpu.memory_space<vmem>>, vector<1x1x128xf32>
    %27 = vector.shape_cast %26 : vector<1x1x128xf32> to vector<1x128xf32>
    %28 = vector.broadcast %25 : f32 to vector<1x128xf32>
    %29 = arith.mulf %28, %27 : vector<1x128xf32>
    %30 = arith.addf %24, %29 : vector<1x128xf32>
    %c1_17 = arith.constant 1 : index
    %31 = memref.load %arg2[%c1_17] : memref<2xf32, #tpu.memory_space<smem>>
    %c1_18 = arith.constant 1 : index
    %c0_19 = arith.constant 0 : index
    %c0_20 = arith.constant 0 : index
    %32 = vector.load %arg7[%c1_18, %c0_19, %c0_20] : memref<2x1x128xf32, #tpu.memory_space<vmem>>, vector<1x1x128xf32>
    %33 = vector.shape_cast %32 : vector<1x1x128xf32> to vector<1x128xf32>
    %34 = vector.broadcast %31 : f32 to vector<1x128xf32>
    %35 = arith.mulf %34, %33 : vector<1x128xf32>
    %36 = arith.addf %30, %35 : vector<1x128xf32>
    %c0_21 = arith.constant 0 : index
    %c0_22 = arith.constant 0 : index
    %37 = vector.load %arg3[%c0_21, %c0_22] : memref<8x128xf32, #tpu.memory_space<vmem>>, vector<8x128xf32>
    %38 = arith.truncf %37 : vector<8x128xf32> to vector<8x128xbf16>
    %39 = arith.truncf %21 : vector<128x128xf32> to vector<128x128xbf16>
    %cst_23 = arith.constant dense<0.000000e+00> : vector<8x128xf32>
    %40 = tpu.matmul %38, %39, %cst_23 {dimension_numbers = #tpu.dot_dimension_numbers<[1], [1], [0], [0], [0, 0, 1, 0], [], []>} : vector<8x128xbf16>, vector<128x128xbf16>, vector<8x128xf32> -> vector<8x128xf32>
    %41 = vector.broadcast %36 : vector<1x128xf32> to vector<8x128xf32>
    %42 = arith.addf %40, %41 : vector<8x128xf32>
    %cst_24 = arith.constant 0.000000e+00 : f32
    %43 = vector.broadcast %cst_24 : f32 to vector<8x128xf32>
    %44 = arith.maximumf %42, %43 : vector<8x128xf32>
    %c0_25 = arith.constant 0 : index
    %c0_26 = arith.constant 0 : index
    %45 = vector.load %arg8[%c0_25, %c0_26] : memref<128x128xf32, #tpu.memory_space<vmem>>, vector<128x128xf32>
    %46 = vector.broadcast %6 : f32 to vector<128x128xf32>
    %47 = arith.mulf %46, %45 : vector<128x128xf32>
    %c0_27 = arith.constant 0 : index
    %48 = memref.load %arg2[%c0_27] : memref<2xf32, #tpu.memory_space<smem>>
    %c0_28 = arith.constant 0 : index
    %c0_29 = arith.constant 0 : index
    %c0_30 = arith.constant 0 : index
    %49 = vector.load %arg9[%c0_28, %c0_29, %c0_30] : memref<2x128x128xf32, #tpu.memory_space<vmem>>, vector<1x128x128xf32>
    %50 = vector.shape_cast %49 : vector<1x128x128xf32> to vector<128x128xf32>
    %51 = vector.broadcast %48 : f32 to vector<128x128xf32>
    %52 = arith.mulf %51, %50 : vector<128x128xf32>
    %53 = arith.addf %47, %52 : vector<128x128xf32>
    %c1_31 = arith.constant 1 : index
    %54 = memref.load %arg2[%c1_31] : memref<2xf32, #tpu.memory_space<smem>>
    %c1_32 = arith.constant 1 : index
    %c0_33 = arith.constant 0 : index
    %c0_34 = arith.constant 0 : index
    %55 = vector.load %arg9[%c1_32, %c0_33, %c0_34] : memref<2x128x128xf32, #tpu.memory_space<vmem>>, vector<1x128x128xf32>
    %56 = vector.shape_cast %55 : vector<1x128x128xf32> to vector<128x128xf32>
    %57 = vector.broadcast %54 : f32 to vector<128x128xf32>
    %58 = arith.mulf %57, %56 : vector<128x128xf32>
    %59 = arith.addf %53, %58 : vector<128x128xf32>
    %c0_35 = arith.constant 0 : index
    %c0_36 = arith.constant 0 : index
    %60 = vector.load %arg13[%c0_35, %c0_36] : memref<8x128xf32, #tpu.memory_space<vmem>>, vector<8x128xf32>
    %61 = arith.truncf %44 : vector<8x128xf32> to vector<8x128xbf16>
    %62 = arith.truncf %59 : vector<128x128xf32> to vector<128x128xbf16>
    %cst_37 = arith.constant dense<0.000000e+00> : vector<8x128xf32>
    %63 = tpu.matmul %61, %62, %cst_37 {dimension_numbers = #tpu.dot_dimension_numbers<[1], [1], [0], [0], [0, 0, 1, 0], [], []>} : vector<8x128xbf16>, vector<128x128xbf16>, vector<8x128xf32> -> vector<8x128xf32>
    %64 = arith.addf %60, %63 : vector<8x128xf32>
    %c0_38 = arith.constant 0 : index
    %c0_39 = arith.constant 0 : index
    %65 = vector.load %arg13[%c0_38, %c0_39] : memref<8x128xf32, #tpu.memory_space<vmem>>, vector<8x128xf32>
    tpu.vector_store %arg13[%c0_38, %c0_39], %64 {strides = array<i32>} : memref<8x128xf32, #tpu.memory_space<vmem>>, vector<8x128xf32>,
    %c1_i32 = arith.constant 1 : i32
    %66 = arith.cmpi eq, %arg1, %c1_i32 : i32
    %67 = arith.extui %66 : i1 to i32
    %c0_i32_40 = arith.constant 0 : i32
    %68 = arith.cmpi ne, %67, %c0_i32_40 : i32
    scf.if %68 {
      %c0_41 = arith.constant 0 : index
      %c0_42 = arith.constant 0 : index
      %69 = vector.load %arg10[%c0_41, %c0_42] : memref<1x128xf32, #tpu.memory_space<vmem>>, vector<1x128xf32>
      %70 = vector.broadcast %6 : f32 to vector<1x128xf32>
      %71 = arith.mulf %70, %69 : vector<1x128xf32>
      %c0_43 = arith.constant 0 : index
      %72 = memref.load %arg2[%c0_43] : memref<2xf32, #tpu.memory_space<smem>>
      %c0_44 = arith.constant 0 : index
      %c0_45 = arith.constant 0 : index
      %c0_46 = arith.constant 0 : index
      %73 = vector.load %arg11[%c0_44, %c0_45, %c0_46] : memref<2x1x128xf32, #tpu.memory_space<vmem>>, vector<1x1x128xf32>
      %74 = vector.shape_cast %73 : vector<1x1x128xf32> to vector<1x128xf32>
      %75 = vector.broadcast %72 : f32 to vector<1x128xf32>
      %76 = arith.mulf %75, %74 : vector<1x128xf32>
      %77 = arith.addf %71, %76 : vector<1x128xf32>
      %c1_47 = arith.constant 1 : index
      %78 = memref.load %arg2[%c1_47] : memref<2xf32, #tpu.memory_space<smem>>
      %c1_48 = arith.constant 1 : index
      %c0_49 = arith.constant 0 : index
      %c0_50 = arith.constant 0 : index
      %79 = vector.load %arg11[%c1_48, %c0_49, %c0_50] : memref<2x1x128xf32, #tpu.memory_space<vmem>>, vector<1x1x128xf32>
      %80 = vector.shape_cast %79 : vector<1x1x128xf32> to vector<1x128xf32>
      %81 = vector.broadcast %78 : f32 to vector<1x128xf32>
      %82 = arith.mulf %81, %80 : vector<1x128xf32>
      %83 = arith.addf %77, %82 : vector<1x128xf32>
      %c0_51 = arith.constant 0 : index
      %c0_52 = arith.constant 0 : index
      %84 = vector.load %arg13[%c0_51, %c0_52] : memref<8x128xf32, #tpu.memory_space<vmem>>, vector<8x128xf32>
      %85 = vector.broadcast %83 : vector<1x128xf32> to vector<8x128xf32>
      %86 = arith.addf %84, %85 : vector<8x128xf32>
      %c0_53 = arith.constant 0 : index
      %c0_54 = arith.constant 0 : index
      %87 = vector.load %arg12[%c0_53, %c0_54] : memref<8x128xf32, #tpu.memory_space<vmem>>, vector<8x128xf32>
      tpu.vector_store %arg12[%c0_53, %c0_54], %86 {strides = array<i32>} : memref<8x128xf32, #tpu.memory_space<vmem>>, vector<8x128xf32>,
    } else {
    }
    return
  }
  func.func @transform_0(%arg0: i32, %arg1: i32) -> i32 {
    %c0_i32 = arith.constant 0 : i32
    %c0_i32_0 = arith.constant 0 : i32
    return %c0_i32 : i32
  }
  func.func @transform_1(%arg0: i32, %arg1: i32) -> (i32, i32) {
    %c0_i32 = arith.constant 0 : i32
    %c0_i32_0 = arith.constant 0 : i32
    return %arg0, %c0_i32 : i32, i32
  }
  func.func @transform_2(%arg0: i32, %arg1: i32) -> (i32, i32) {
    %c0_i32 = arith.constant 0 : i32
    %c0_i32_0 = arith.constant 0 : i32
    return %arg1, %c0_i32 : i32, i32
  }
  func.func @transform_3(%arg0: i32, %arg1: i32) -> (i32, i32, i32) {
    %c0_i32 = arith.constant 0 : i32
    %c0_i32_0 = arith.constant 0 : i32
    %c0_i32_1 = arith.constant 0 : i32
    return %c0_i32, %arg1, %c0_i32_0 : i32, i32, i32
  }
  func.func @transform_4(%arg0: i32, %arg1: i32) -> (i32, i32) {
    %c0_i32 = arith.constant 0 : i32
    %c0_i32_0 = arith.constant 0 : i32
    return %c0_i32, %arg1 : i32, i32
  }
  func.func @transform_5(%arg0: i32, %arg1: i32) -> (i32, i32, i32) {
    %c0_i32 = arith.constant 0 : i32
    %c0_i32_0 = arith.constant 0 : i32
    %c0_i32_1 = arith.constant 0 : i32
    return %c0_i32, %c0_i32_0, %arg1 : i32, i32, i32
  }
  func.func @transform_6(%arg0: i32, %arg1: i32) -> (i32, i32) {
    %c0_i32 = arith.constant 0 : i32
    %c0_i32_0 = arith.constant 0 : i32
    return %c0_i32, %arg1 : i32, i32
  }
  func.func @transform_7(%arg0: i32, %arg1: i32) -> (i32, i32, i32) {
    %c0_i32 = arith.constant 0 : i32
    %c0_i32_0 = arith.constant 0 : i32
    %c0_i32_1 = arith.constant 0 : i32
    return %c0_i32, %c0_i32_0, %arg1 : i32, i32, i32
  }
  func.func @transform_8(%arg0: i32, %arg1: i32) -> (i32, i32) {
    %c0_i32 = arith.constant 0 : i32
    %c0_i32_0 = arith.constant 0 : i32
    %c0_i32_1 = arith.constant 0 : i32
    return %c0_i32, %c0_i32_0 : i32, i32
  }
  func.func @transform_9(%arg0: i32, %arg1: i32) -> (i32, i32, i32) {
    %c0_i32 = arith.constant 0 : i32
    %c0_i32_0 = arith.constant 0 : i32
    %c0_i32_1 = arith.constant 0 : i32
    %c0_i32_2 = arith.constant 0 : i32
    return %c0_i32, %c0_i32_0, %c0_i32_1 : i32, i32, i32
  }
  func.func @transform_10(%arg0: i32, %arg1: i32) -> (i32, i32) {
    %c0_i32 = arith.constant 0 : i32
    %c0_i32_0 = arith.constant 0 : i32
    return %arg0, %c0_i32 : i32, i32
  }
}

</mosaic_0001>

<llo_original>
// kernel: tpu_custom_call.1
$region0: #{tpu_custom_call.1}
  #allocation0 [shape = 'u32[]', space=smem, size = 0x4, offset = 0x4, fixed_abs, tag = 'smem constant byte address 0x4 - core index']
  #allocation1 [shape = 'u32[144,128]{1,0:T(1,128)}', space=vmem, size = 0x12000, scoped, tag = 'internal scratch']
  #allocation2 [shape = 'f32[8,128]{1,0:T(8,128)}', space=vmem, size = 0x1000, scoped, tag = 'scratch operand']
  #allocation16 [shape = 's32[]', space=sflag, size = 0x4, offset = 0, fixed_abs, tag = 'sflag constant byte address 0x0 - dummy sync flag']
  %s0 = inlined_call_operand.hbm [shape: f32[2], index: 0, kind: input, shape index: {}]
  %s1 = inlined_call_operand.hbm [shape: f32[8,128], index: 1, kind: input, shape index: {}]
  %s2 = inlined_call_operand.hbm [shape: f32[256,128], index: 2, kind: input, shape index: {}]
  %s3 = inlined_call_operand.hbm [shape: f32[2,256,128], index: 3, kind: input, shape index: {}]
  %s4 = inlined_call_operand.vmem [shape: f32[1,256], index: 4, kind: input, shape index: {}]
  %s5 = inlined_call_operand.vmem [shape: f32[2,1,256], index: 5, kind: input, shape index: {}]
  %s6 = inlined_call_operand.hbm [shape: f32[128,256], index: 6, kind: input, shape index: {}]
  %s7 = inlined_call_operand.hbm [shape: f32[2,128,256], index: 7, kind: input, shape index: {}]
  %s8 = inlined_call_operand.vmem [shape: f32[1,128], index: 8, kind: input, shape index: {}]
  %s9 = inlined_call_operand.vmem [shape: f32[2,1,128], index: 9, kind: input, shape index: {}]
  %s10 = inlined_call_operand.hbm [shape: f32[8,128], index: 10, kind: output, shape index: {}]
  %s11 = sld [smem:[#allocation0]]
  $region139: #{tpu_custom_call.1} parent=0
    _
  %s13 = ssub.s32 1, %s11
  %s14 = scalar_select 0, %s13, %s11
  $region1: #{tpu_custom_call.1} parent=0
    #allocation3 [shape = 'u8[512]{0}', space=smem, size = 0x200, scoped, tag = 'input window, operand 0, single buffered']
    #allocation4 [shape = 's32[2]{0}', space=sflag, size = 0x8, scoped, tag = 'scoped memory for tpu_custom_call.1']
    #allocation5 [shape = 's32[2]{0}', space=sflag, size = 0x8, scoped, tag = 'scoped memory for tpu_custom_call.1']
    #allocation6 [shape = 's32[2]{0}', space=sflag, size = 0x8, scoped, tag = 'scoped memory for tpu_custom_call.1']
    #allocation7 [shape = 'u8[4096]{0}', space=vmem, size = 0x1000, scoped, tag = 'input window, operand 1, single buffered']
    #allocation8 [shape = 'u8[131072]{0}', space=vmem, size = 0x20000, scoped, tag = 'input window, operand 2']
    #allocation9 [shape = 's32[2]{0}', space=sflag, size = 0x8, scoped, tag = 'scoped memory for tpu_custom_call.1']
    #allocation10 [shape = 'u8[262144]{0}', space=vmem, size = 0x40000, scoped, tag = 'input window, operand 3']
    #allocation11 [shape = 'u8[2048]{0}', space=vmem, size = 0x800, scoped, tag = 'input window, operand 5']
    #allocation12 [shape = 'u8[131072]{0}', space=vmem, size = 0x20000, scoped, tag = 'input window, operand 6']
    #allocation13 [shape = 's32[2]{0}', space=sflag, size = 0x8, scoped, tag = 'scoped memory for tpu_custom_call.1']
    #allocation14 [shape = 'u8[262144]{0}', space=vmem, size = 0x40000, scoped, tag = 'input window, operand 7']
    #allocation15 [shape = 'u8[4096]{0}', space=vmem, size = 0x1000, scoped, tag = 'output window, operand 0, single buffered']
    %15 = vsyncpa [#allocation6], 0
    %16 = vsyncpa [#allocation4], 0
    %17 = vsyncpa [#allocation9], 0
    %s18 = scalar_lea.sflag [#allocation9], 1
    %19 = vsyncpa %s18, 0
    %20 = vsyncpa [#allocation13], 0
    %s21 = scalar_lea.sflag [#allocation13], 1
    %22 = vsyncpa %s21, 0
    %23 = vsyncpa [#allocation5], 0
    loop: start=0, step=1, limit=4
    $region2: #{tpu_custom_call.1} parent=1 // loop_pre_header
      _
    $region3: #{tpu_custom_call.1} parent=1 // loop_header
      %s25 = sphi 0, %s29
      %p26 = scmp.ge.s32.totalorder %s25, 4
      %s32 = sphi 0, %s44
      %s33 = sphi 0, %s40
      %s34 = sphi 0, %s32
      %s35 = sphi 0, %s33
      %s36 = sphi 0, %s34
      %s37 = sphi 0, %s35
      %s45 = sphi 0, %s45
      %s47 = sphi 0, %s45
      %s48 = sphi 0, %s47
      %s62 = sphi 0, %s48
      %s68 = sphi 0, %s70
      %s71 = sphi 0, %s68
      %s72 = sphi 0, %s71
      %s88 = sphi 0, %s72
      %s94 = sphi 0, %s96
      %s97 = sphi 0, %s94
      %s98 = sphi 0, %s97
      %s114 = sphi 0, %s98
      %s120 = sphi 0, %s122
      %s123 = sphi 0, %s120
      %s124 = sphi 0, %s123
      %s140 = sphi 0, %s124
      %s146 = sphi 0, %s148
      %s149 = sphi 0, %s146
      %s150 = sphi 0, %s149
      %s166 = sphi 0, %s150
      %s172 = sphi 0, %s174
      %s175 = sphi 0, %s172
      %s176 = sphi 0, %s175
      %s192 = sphi 0, %s176
      %s198 = sphi 0, %s200
      %s201 = sphi 0, %s198
      %s202 = sphi 0, %s201
      %s218 = sphi 0, %s202
      %s224 = sphi 0, %s226
      %s227 = sphi 0, %s224
      %s228 = sphi 0, %s227
      %s244 = sphi 0, %s228
      %s248 = sphi 0, %s248
      %s250 = sphi 0, %s248
      %s251 = sphi 0, %s250
      %s265 = sphi 0, %s251
      %s269 = sphi 0, %s269
      %s271 = sphi 0, %s269
      %s272 = sphi 0, %s271
      %s286 = sphi 0, %s272
      %s292 = sphi 0, %s294
      %s295 = sphi 0, %s292
      %s296 = sphi 0, %s295
      %s312 = sphi 0, %s296
    $region4: #{tpu_custom_call.1} parent=1 // loop_header_branch
      %28 = sbr.rel (%p26) target = $region8
    $region5: #{tpu_custom_call.1} parent=1 // loop_body
      %s30 = ssub.s32 %s25, 1
      %s31 = ssub.s32 %s25, 2
      %s38 = sadd.s32 1, %s33
      %p39 = scmp.ge.s32.totalorder %s38, 2
      %s40 = scalar_select %p39, 0, %s38
      %s41 = sadd.s32 1, %s32
      %s42 = scalar_select %p39, %s41, %s32
      %p43 = scmp.ge.s32.totalorder %s42, 1
      %s44 = scalar_select %p43, 0, %s42
      %s46 = sadd.s32 %s45, 1
      %p49 = scmp.eq.s32.totalorder %s25, 1
      %p50 = scmp.ne.s32.totalorder %s45, %s47
      %p51 = scmp.eq.s32.totalorder %s25, 0
      %p52 = por %p50, %p51
      %p53 = scmp.ne.s32.totalorder %s45, %s47
      %p54 = scmp.eq.s32.totalorder %s30, 1
      %p55 = por %p53, %p54
      %p56 = scmp.ne.s32.totalorder %s47, %s48
      %p57 = scmp.eq.s32.totalorder %s30, 0
      %p58 = por %p56, %p57
      %p59 = scmp.ne.s32.totalorder %s47, %s48
      %p60 = scmp.eq.s32.totalorder %s31, 1
      %p61 = por %p59, %p60
      %p63 = scmp.ne.s32.totalorder %s48, %s62
      %p64 = scmp.eq.s32.totalorder %s31, 0
      %p65 = por %p63, %p64
      %s66 = ssub.s32 %s32, %s44
      %p67 = scmp.eq.s32.totalorder %s66, 0
      %s69 = sadd.s32 %s68, 1
      %s70 = scalar_select %p67, %s68, %s69
      %p73 = pneg %p67
      %p74 = scmp.eq.s32.totalorder %s25, 1
      %p75 = por %p73, %p74
      %p76 = scmp.ne.s32.totalorder %s68, %s71
      %p77 = scmp.eq.s32.totalorder %s25, 0
      %p78 = por %p76, %p77
      %p79 = scmp.ne.s32.totalorder %s68, %s71
      %p80 = scmp.eq.s32.totalorder %s30, 1
      %p81 = por %p79, %p80
      %p82 = scmp.ne.s32.totalorder %s71, %s72
      %p83 = scmp.eq.s32.totalorder %s30, 0
      %p84 = por %p82, %p83
      %p85 = scmp.ne.s32.totalorder %s71, %s72
      %p86 = scmp.eq.s32.totalorder %s31, 1
      %p87 = por %p85, %p86
      %p89 = scmp.ne.s32.totalorder %s72, %s88
      %p90 = scmp.eq.s32.totalorder %s31, 0
      %p91 = por %p89, %p90
      %s92 = ssub.s32 %s33, %s40
      %p93 = scmp.eq.s32.totalorder %s92, 0
      %s95 = sadd.s32 %s94, 1
      %s96 = scalar_select %p93, %s94, %s95
      %p99 = pneg %p93
      %p100 = scmp.eq.s32.totalorder %s25, 1
      %p101 = por %p99, %p100
      %p102 = scmp.ne.s32.totalorder %s94, %s97
      %p103 = scmp.eq.s32.totalorder %s25, 0
      %p104 = por %p102, %p103
      %p105 = scmp.ne.s32.totalorder %s94, %s97
      %p106 = scmp.eq.s32.totalorder %s30, 1
      %p107 = por %p105, %p106
      %p108 = scmp.ne.s32.totalorder %s97, %s98
      %p109 = scmp.eq.s32.totalorder %s30, 0
      %p110 = por %p108, %p109
      %p111 = scmp.ne.s32.totalorder %s97, %s98
      %p112 = scmp.eq.s32.totalorder %s31, 1
      %p113 = por %p111, %p112
      %p115 = scmp.ne.s32.totalorder %s98, %s114
      %p116 = scmp.eq.s32.totalorder %s31, 0
      %p117 = por %p115, %p116
      %s118 = ssub.s32 %s33, %s40
      %p119 = scmp.eq.s32.totalorder %s118, 0
      %s121 = sadd.s32 %s120, 1
      %s122 = scalar_select %p119, %s120, %s121
      %p125 = pneg %p119
      %p126 = scmp.eq.s32.totalorder %s25, 1
      %p127 = por %p125, %p126
      %p128 = scmp.ne.s32.totalorder %s120, %s123
      %p129 = scmp.eq.s32.totalorder %s25, 0
      %p130 = por %p128, %p129
      %p131 = scmp.ne.s32.totalorder %s120, %s123
      %p132 = scmp.eq.s32.totalorder %s30, 1
      %p133 = por %p131, %p132
      %p134 = scmp.ne.s32.totalorder %s123, %s124
      %p135 = scmp.eq.s32.totalorder %s30, 0
      %p136 = por %p134, %p135
      %p137 = scmp.ne.s32.totalorder %s123, %s124
      %p138 = scmp.eq.s32.totalorder %s31, 1
      %p139 = por %p137, %p138
      %p141 = scmp.ne.s32.totalorder %s124, %s140
      %p142 = scmp.eq.s32.totalorder %s31, 0
      %p143 = por %p141, %p142
      %s144 = ssub.s32 %s33, %s40
      %p145 = scmp.eq.s32.totalorder %s144, 0
      %s147 = sadd.s32 %s146, 1
      %s148 = scalar_select %p145, %s146, %s147
      %p151 = pneg %p145
      %p152 = scmp.eq.s32.totalorder %s25, 1
      %p153 = por %p151, %p152
      %p154 = scmp.ne.s32.totalorder %s146, %s149
      %p155 = scmp.eq.s32.totalorder %s25, 0
      %p156 = por %p154, %p155
      %p157 = scmp.ne.s32.totalorder %s146, %s149
      %p158 = scmp.eq.s32.totalorder %s30, 1
      %p159 = por %p157, %p158
      %p160 = scmp.ne.s32.totalorder %s149, %s150
      %p161 = scmp.eq.s32.totalorder %s30, 0
      %p162 = por %p160, %p161
      %p163 = scmp.ne.s32.totalorder %s149, %s150
      %p164 = scmp.eq.s32.totalorder %s31, 1
      %p165 = por %p163, %p164
      %p167 = scmp.ne.s32.totalorder %s150, %s166
      %p168 = scmp.eq.s32.totalorder %s31, 0
      %p169 = por %p167, %p168
      %s170 = ssub.s32 %s33, %s40
      %p171 = scmp.eq.s32.totalorder %s170, 0
      %s173 = sadd.s32 %s172, 1
      %s174 = scalar_select %p171, %s172, %s173
      %p177 = pneg %p171
      %p178 = scmp.eq.s32.totalorder %s25, 1
      %p179 = por %p177, %p178
      %p180 = scmp.ne.s32.totalorder %s172, %s175
      %p181 = scmp.eq.s32.totalorder %s25, 0
      %p182 = por %p180, %p181
      %p183 = scmp.ne.s32.totalorder %s172, %s175
      %p184 = scmp.eq.s32.totalorder %s30, 1
      %p185 = por %p183, %p184
      %p186 = scmp.ne.s32.totalorder %s175, %s176
      %p187 = scmp.eq.s32.totalorder %s30, 0
      %p188 = por %p186, %p187
      %p189 = scmp.ne.s32.totalorder %s175, %s176
      %p190 = scmp.eq.s32.totalorder %s31, 1
      %p191 = por %p189, %p190
      %p193 = scmp.ne.s32.totalorder %s176, %s192
      %p194 = scmp.eq.s32.totalorder %s31, 0
      %p195 = por %p193, %p194
      %s196 = ssub.s32 %s33, %s40
      %p197 = scmp.eq.s32.totalorder %s196, 0
      %s199 = sadd.s32 %s198, 1
      %s200 = scalar_select %p197, %s198, %s199
      %p203 = pneg %p197
      %p204 = scmp.eq.s32.totalorder %s25, 1
      %p205 = por %p203, %p204
      %p206 = scmp.ne.s32.totalorder %s198, %s201
      %p207 = scmp.eq.s32.totalorder %s25, 0
      %p208 = por %p206, %p207
      %p209 = scmp.ne.s32.totalorder %s198, %s201
      %p210 = scmp.eq.s32.totalorder %s30, 1
      %p211 = por %p209, %p210
      %p212 = scmp.ne.s32.totalorder %s201, %s202
      %p213 = scmp.eq.s32.totalorder %s30, 0
      %p214 = por %p212, %p213
      %p215 = scmp.ne.s32.totalorder %s201, %s202
      %p216 = scmp.eq.s32.totalorder %s31, 1
      %p217 = por %p215, %p216
      %p219 = scmp.ne.s32.totalorder %s202, %s218
      %p220 = scmp.eq.s32.totalorder %s31, 0
      %p221 = por %p219, %p220
      %s222 = ssub.s32 %s33, %s40
      %p223 = scmp.eq.s32.totalorder %s222, 0
      %s225 = sadd.s32 %s224, 1
      %s226 = scalar_select %p223, %s224, %s225
      %p229 = pneg %p223
      %p230 = scmp.eq.s32.totalorder %s25, 1
      %p231 = por %p229, %p230
      %p232 = scmp.ne.s32.totalorder %s224, %s227
      %p233 = scmp.eq.s32.totalorder %s25, 0
      %p234 = por %p232, %p233
      %p235 = scmp.ne.s32.totalorder %s224, %s227
      %p236 = scmp.eq.s32.totalorder %s30, 1
      %p237 = por %p235, %p236
      %p238 = scmp.ne.s32.totalorder %s227, %s228
      %p239 = scmp.eq.s32.totalorder %s30, 0
      %p240 = por %p238, %p239
      %p241 = scmp.ne.s32.totalorder %s227, %s228
      %p242 = scmp.eq.s32.totalorder %s31, 1
      %p243 = por %p241, %p242
      %p245 = scmp.ne.s32.totalorder %s228, %s244
      %p246 = scmp.eq.s32.totalorder %s31, 0
      %p247 = por %p245, %p246
      %s249 = sadd.s32 %s248, 1
      %p252 = scmp.eq.s32.totalorder %s25, 1
      %p253 = scmp.ne.s32.totalorder %s248, %s250
      %p254 = scmp.eq.s32.totalorder %s25, 0
      %p255 = por %p253, %p254
      %p256 = scmp.ne.s32.totalorder %s248, %s250
      %p257 = scmp.eq.s32.totalorder %s30, 1
      %p258 = por %p256, %p257
      %p259 = scmp.ne.s32.totalorder %s250, %s251
      %p260 = scmp.eq.s32.totalorder %s30, 0
      %p261 = por %p259, %p260
      %p262 = scmp.ne.s32.totalorder %s250, %s251
      %p263 = scmp.eq.s32.totalorder %s31, 1
      %p264 = por %p262, %p263
      %p266 = scmp.ne.s32.totalorder %s251, %s265
      %p267 = scmp.eq.s32.totalorder %s31, 0
      %p268 = por %p266, %p267
      %s270 = sadd.s32 %s269, 1
      %p273 = scmp.eq.s32.totalorder %s25, 1
      %p274 = scmp.ne.s32.totalorder %s269, %s271
      %p275 = scmp.eq.s32.totalorder %s25, 0
      %p276 = por %p274, %p275
      %p277 = scmp.ne.s32.totalorder %s269, %s271
      %p278 = scmp.eq.s32.totalorder %s30, 1
      %p279 = por %p277, %p278
      %p280 = scmp.ne.s32.totalorder %s271, %s272
      %p281 = scmp.eq.s32.totalorder %s30, 0
      %p282 = por %p280, %p281
      %p283 = scmp.ne.s32.totalorder %s271, %s272
      %p284 = scmp.eq.s32.totalorder %s31, 1
      %p285 = por %p283, %p284
      %p287 = scmp.ne.s32.totalorder %s272, %s286
      %p288 = scmp.eq.s32.totalorder %s31, 0
      %p289 = por %p287, %p288
      %s290 = ssub.s32 %s32, %s44
      %p291 = scmp.eq.s32.totalorder %s290, 0
      %s293 = sadd.s32 %s292, 1
      %s294 = scalar_select %p291, %s292, %s293
      %p297 = pneg %p291
      %p298 = scmp.eq.s32.totalorder %s25, 1
      %p299 = por %p297, %p298
      %p300 = scmp.ne.s32.totalorder %s292, %s295
      %p301 = scmp.eq.s32.totalorder %s25, 0
      %p302 = por %p300, %p301
      %p303 = scmp.ne.s32.totalorder %s292, %s295
      %p304 = scmp.eq.s32.totalorder %s30, 1
      %p305 = por %p303, %p304
      %p306 = scmp.ne.s32.totalorder %s295, %s296
      %p307 = scmp.eq.s32.totalorder %s30, 0
      %p308 = por %p306, %p307
      %p309 = scmp.ne.s32.totalorder %s295, %s296
      %p310 = scmp.eq.s32.totalorder %s31, 1
      %p311 = por %p309, %p310
      %p313 = scmp.ne.s32.totalorder %s296, %s312
      %p314 = scmp.eq.s32.totalorder %s31, 0
      %p315 = por %p313, %p314
      %p316 = scmp.le.s32.totalorder 1, %s25
      %p317 = scmp.lt.s32.totalorder %s25, 3
      %p318 = pnand %p316, %p317
      %p319 = pneg %p318
      // Predicated region
      $region9: #{tpu_custom_call.1} parent=5 // pred_check
        _
      $region10: #{tpu_custom_call.1} parent=5 // pred_check_branch
        %321 = sbr.rel (%p318) target = $region12
      $region11: #{tpu_custom_call.1} parent=5 // pred_region
        %s322 = ssub.s32 %s25, 1
        // Predicated region
        $region13: #{tpu_custom_call.1} parent=11 // pred_check
          %p323 = pneg %p58
        $region14: #{tpu_custom_call.1} parent=11 // pred_check_branch
          %325 = sbr.rel (%p323) target = $region16
        $region15: #{tpu_custom_call.1} parent=11 // pred_region
          %s327 = ssub.s32 16, 16
          %328 = vsyncadd [#allocation6], %s327
          %331 = dma.hbm_to_smem %s0, 16, [#allocation3], [#allocation6]
        $region16: #{tpu_custom_call.1} parent=11 // pred_fallthru
          _
        // Predicated region
        $region17: #{tpu_custom_call.1} parent=11 // pred_check
          %p332 = pneg %p84
        $region18: #{tpu_custom_call.1} parent=11 // pred_check_branch
          %334 = sbr.rel (%p332) target = $region20
        $region19: #{tpu_custom_call.1} parent=11 // pred_region
          %s336 = ssub.s32 128, 128
          %337 = vsyncadd [#allocation4], %s336
          %s338 = smul.addr %s34, 128
          %s339 = scalar_lea.hbm %s1, %s338
          %s341 = sshll.u32 [#allocation7], 4
          %s342 = int_to_ptr.vmem [resolvable:$true] %s341
          %344 = dma.hbm_to_vmem [thread:$0]  %s339, 128, %s342, [#allocation4]
        $region20: #{tpu_custom_call.1} parent=11 // pred_fallthru
          _
        // Predicated region
        $region21: #{tpu_custom_call.1} parent=11 // pred_check
          %p345 = pneg %p261
        $region22: #{tpu_custom_call.1} parent=11 // pred_check_branch
          %347 = sbr.rel (%p345) target = $region24
        $region23: #{tpu_custom_call.1} parent=11 // pred_region
          _
        $region24: #{tpu_custom_call.1} parent=11 // pred_fallthru
          _
        // Predicated region
        $region25: #{tpu_custom_call.1} parent=11 // pred_check
          %p348 = pneg %p282
        $region26: #{tpu_custom_call.1} parent=11 // pred_check_branch
          %350 = sbr.rel (%p348) target = $region28
        $region27: #{tpu_custom_call.1} parent=11 // pred_region
          _
        $region28: #{tpu_custom_call.1} parent=11 // pred_fallthru
          _
      $region12: #{tpu_custom_call.1} parent=5 // pred_fallthru
        _
      %p351 = scmp.lt.s32.totalorder %s25, 2
      // Predicated region
      $region29: #{tpu_custom_call.1} parent=5 // pred_check
        %p352 = pneg %p351
      $region30: #{tpu_custom_call.1} parent=5 // pred_check_branch
        %354 = sbr.rel (%p352) target = $region32
      $region31: #{tpu_custom_call.1} parent=5 // pred_region
        // Predicated region
        $region33: #{tpu_custom_call.1} parent=31 // pred_check
          %p355 = pneg %p104
        $region34: #{tpu_custom_call.1} parent=31 // pred_check_branch
          %357 = sbr.rel (%p355) target = $region36
        $region35: #{tpu_custom_call.1} parent=31 // pred_region
          %s358 = sand.u32 %s25, 1
          %s359 = scalar_lea.sflag [#allocation9], %s358
          %s360 = sand.u32 %s94, 1
          %s361 = smul.addr %s360, 128
          %s362 = scalar_lea.vmem [#allocation8], %s361
          %s363 = smul.u32 16, %s33
          %s365 = ssub.s32 2048, 2048
          %366 = vsyncadd %s359, %s365
          %s367 = smul.addr %s363, 128
          %s368 = scalar_lea.hbm %s2, %s367
          %s369 = sshll.u32 %s362, 4
          %s370 = int_to_ptr.vmem [resolvable:$true] %s369
          %375 = dma.hbm_to_vmem [thread:$0]  %s368, 2048, %s370, %s359, 128, 128, 8
        $region36: #{tpu_custom_call.1} parent=31 // pred_fallthru
          _
        // Predicated region
        $region37: #{tpu_custom_call.1} parent=31 // pred_check
          %p376 = pneg %p130
        $region38: #{tpu_custom_call.1} parent=31 // pred_check_branch
          %378 = sbr.rel (%p376) target = $region40
        $region39: #{tpu_custom_call.1} parent=31 // pred_region
          #allocation17 [shape = 'u32[6]{0}', space=smem, size = 0x18, scoped, tag = 'DMA stride descriptor']
          %s379 = sand.u32 %s25, 1
          %s380 = scalar_lea.sflag [#allocation9], %s379
          %s381 = sand.u32 %s120, 1
          %s382 = smul.addr %s381, 256
          %s383 = scalar_lea.vmem [#allocation10], %s382
          %s384 = smul.u32 16, %s33
          %s386 = ssub.s32 4096, 4096
          %387 = vsyncadd %s380, %s386
          %s388 = smul.addr %s384, 128
          %s389 = scalar_lea.hbm %s3, %s388
          %s391 = sshll.u32 1, 14
          %s392 = sxor.u32 4294967295, %s391
          %s394 = sld [smem:[#allocation0]]
          %s395 = sadd.s32 2, %s394
          %s397 = sshll.u32 7, 26
          %s398 = sxor.u32 4294967295, %s397
          %s399 = sand.u32 0, %s398
          %s400 = sshll.u32 %s395, 26
          %s401 = sor.u32 %s399, %s400
          %s402 = sshll.u32 %s383, 4
          %s403 = int_to_ptr.vmem [resolvable:$true] %s402
          %409 = sst [smem:[#allocation17]] 4096
          %s410 = scalar_lea.smem [#allocation17], 1
          %411 = sst [smem:[%s410]] 2048
          %s412 = scalar_lea.smem [#allocation17], 2
          %413 = sst [smem:[%s412]] 16
          %s414 = scalar_lea.smem [#allocation17], 3
          %415 = sst [smem:[%s414]] 128
          %s416 = scalar_lea.smem [#allocation17], 4
          %417 = sst [smem:[%s416]] 128
          %s418 = scalar_lea.smem [#allocation17], 5
          %419 = sst [smem:[%s418]] 8
          %421 = dma.general %s389, 4096, %s403, %s380, [#allocation16], [#allocation17], %s401, 0
        $region40: #{tpu_custom_call.1} parent=31 // pred_fallthru
          _
        // Predicated region
        $region41: #{tpu_custom_call.1} parent=31 // pred_check
          %p422 = pneg %p156
        $region42: #{tpu_custom_call.1} parent=31 // pred_check_branch
          %424 = sbr.rel (%p422) target = $region44
        $region43: #{tpu_custom_call.1} parent=31 // pred_region
          %p425 = scmp.lt.s32.totalorder %s33, 1
          %s426 = scalar_select %p425, %s33, 1
          %s427 = scalar_lea.vmem %s4, %s426
        $region44: #{tpu_custom_call.1} parent=31 // pred_fallthru
          _
        // Predicated region
        $region45: #{tpu_custom_call.1} parent=31 // pred_check
          %p428 = pneg %p182
        $region46: #{tpu_custom_call.1} parent=31 // pred_check_branch
          %430 = sbr.rel (%p428) target = $region48
        $region47: #{tpu_custom_call.1} parent=31 // pred_region
          %s431 = sand.u32 %s172, 1
          %s432 = sand.u32 %s172, 1
          %s433 = smul.addr %s432, 2
          %s434 = scalar_lea.vmem [#allocation11], %s433
          %s435 = scalar_lea.vmem %s5, %s33
          // Predicated region
          $region49: #{tpu_custom_call.1} parent=47 // pred_check
            _
          $region50: #{tpu_custom_call.1} parent=47 // pred_check_branch
            %437 = sbr.rel (0) target = $region52
          $region51: #{tpu_custom_call.1} parent=47 // pred_region
            // Predicated region
            $region53: #{tpu_custom_call.1} parent=51 // pred_check
              _
            $region54: #{tpu_custom_call.1} parent=51 // pred_check_branch
              %439 = sbr.rel target = $region56
            $region55: #{tpu_custom_call.1} parent=51 // pred_region
              // Predicated region
              $region68: #{tpu_custom_call.1} parent=55 // pred_check
                _
              $region69: #{tpu_custom_call.1} parent=55 // pred_check_branch
                %456 = sbr.rel (0) target = $region71
              $region70: #{tpu_custom_call.1} parent=55 // pred_region
                loop: start=0, step=1, limit=1
                $region72: #{tpu_custom_call.1} parent=70 // loop_pre_header
                  _
                $region73: #{tpu_custom_call.1} parent=70 // loop_header
                  %s459 = sphi 0, %s463
                  %p460 = scmp.ge.s32.totalorder %s459, 1
                  %s464 = sphi %s435, %s435
                  %s465 = sphi %s434, %s434
                $region74: #{tpu_custom_call.1} parent=70 // loop_header_branch
                  %462 = sbr.rel (%p460) target = $region78
                $region75: #{tpu_custom_call.1} parent=70 // loop_body
                  %v466 = vld [vmem:[%s464] sm:$0x1]
                  %467 = vst [vmem:[%s465] sm:$0x1] %v466
                  %v468 = vld [vmem:[%s464 + $0x2] sm:$0x1]
                  %469 = vst [vmem:[%s465 + $0x1] sm:$0x1] %v468
                $region76: #{tpu_custom_call.1} parent=70 // loop_footer
                  %s463 = sadd.s32 1, %s459
                $region77: #{tpu_custom_call.1} parent=70 // loop_footer_branch
                  %458 = sbr.rel target = $region73
                $region78: #{tpu_custom_call.1} parent=70 // loop_exit
                  _
              $region71: #{tpu_custom_call.1} parent=55 // pred_fallthru
                _
            $region56: #{tpu_custom_call.1} parent=51 // pred_fallthru
              _
            // Predicated region
            $region57: #{tpu_custom_call.1} parent=51 // pred_check
              _
            $region58: #{tpu_custom_call.1} parent=51 // pred_check_branch
              %441 = sbr.rel (0) target = $region60
            $region59: #{tpu_custom_call.1} parent=51 // pred_region
              loop: start=0, step=1, limit=1
              $region61: #{tpu_custom_call.1} parent=59 // loop_pre_header
                _
              $region62: #{tpu_custom_call.1} parent=59 // loop_header
                %s444 = sphi 0, %s448
                %p445 = scmp.ge.s32.totalorder %s444, 1
                %s449 = sphi %s435, %s435
                %s450 = sphi %s434, %s434
              $region63: #{tpu_custom_call.1} parent=59 // loop_header_branch
                %447 = sbr.rel (%p445) target = $region67
              $region64: #{tpu_custom_call.1} parent=59 // loop_body
                %v451 = vld [vmem:[%s449] sm:$0x1]
                %452 = vst [vmem:[%s450] sm:$0x1] %v451
                %v453 = vld [vmem:[%s449 + $0x2] sm:$0x1]
                %454 = vst [vmem:[%s450 + $0x1] sm:$0x1] %v453
              $region65: #{tpu_custom_call.1} parent=59 // loop_footer
                %s448 = sadd.s32 1, %s444
              $region66: #{tpu_custom_call.1} parent=59 // loop_footer_branch
                %443 = sbr.rel target = $region62
              $region67: #{tpu_custom_call.1} parent=59 // loop_exit
                _
            $region60: #{tpu_custom_call.1} parent=51 // pred_fallthru
              _
          $region52: #{tpu_custom_call.1} parent=47 // pred_fallthru
            _
          %470 = vnop
        $region48: #{tpu_custom_call.1} parent=31 // pred_fallthru
          _
        // Predicated region
        $region79: #{tpu_custom_call.1} parent=31 // pred_check
          %p471 = pneg %p208
        $region80: #{tpu_custom_call.1} parent=31 // pred_check_branch
          %473 = sbr.rel (%p471) target = $region82
        $region81: #{tpu_custom_call.1} parent=31 // pred_region
          %s474 = sand.u32 %s25, 1
          %s475 = scalar_lea.sflag [#allocation13], %s474
          %s476 = sand.u32 %s198, 1
          %s477 = smul.addr %s476, 128
          %s478 = scalar_lea.vmem [#allocation12], %s477
          %s480 = ssub.s32 2048, 2048
          %481 = vsyncadd %s475, %s480
          %s482 = smul.addr %s33, 128
          %s483 = scalar_lea.hbm %s6, %s482
          %s484 = sshll.u32 %s478, 4
          %s485 = int_to_ptr.vmem [resolvable:$true] %s484
          %490 = dma.hbm_to_vmem [thread:$0]  %s483, 2048, %s485, %s475, 256, 128, 8
        $region82: #{tpu_custom_call.1} parent=31 // pred_fallthru
          _
        // Predicated region
        $region83: #{tpu_custom_call.1} parent=31 // pred_check
          %p491 = pneg %p234
        $region84: #{tpu_custom_call.1} parent=31 // pred_check_branch
          %493 = sbr.rel (%p491) target = $region86
        $region85: #{tpu_custom_call.1} parent=31 // pred_region
          %s494 = sand.u32 %s25, 1
          %s495 = scalar_lea.sflag [#allocation13], %s494
          %s496 = sand.u32 %s224, 1
          %s497 = smul.addr %s496, 256
          %s498 = scalar_lea.vmem [#allocation14], %s497
          %s500 = ssub.s32 4096, 4096
          %501 = vsyncadd %s495, %s500
          %s502 = smul.addr %s33, 128
          %s503 = scalar_lea.hbm %s7, %s502
          %s504 = sshll.u32 %s498, 4
          %s505 = int_to_ptr.vmem [resolvable:$true] %s504
          %510 = dma.hbm_to_vmem [thread:$0]  %s503, 4096, %s505, %s495, 256, 128, 8
        $region86: #{tpu_custom_call.1} parent=31 // pred_fallthru
          _
      $region32: #{tpu_custom_call.1} parent=5 // pred_fallthru
        _
      %p511 = scmp.le.s32.totalorder 1, %s25
      %p512 = scmp.lt.s32.totalorder %s25, 3
      %p513 = pnand %p511, %p512
      %p514 = pneg %p513
      // Predicated region
      $region87: #{tpu_custom_call.1} parent=5 // pred_check
        _
      $region88: #{tpu_custom_call.1} parent=5 // pred_check_branch
        %516 = sbr.rel (%p513) target = $region90
      $region89: #{tpu_custom_call.1} parent=5 // pred_region
        %s517 = ssub.s32 %s25, 1
        // Predicated region
        $region91: #{tpu_custom_call.1} parent=89 // pred_check
          %p518 = pneg %p58
        $region92: #{tpu_custom_call.1} parent=89 // pred_check_branch
          %520 = sbr.rel (%p518) target = $region94
        $region93: #{tpu_custom_call.1} parent=89 // pred_region
          %521 = dma.done [#allocation6], 16
        $region94: #{tpu_custom_call.1} parent=89 // pred_fallthru
          _
        // Predicated region
        $region95: #{tpu_custom_call.1} parent=89 // pred_check
          %p522 = pneg %p84
        $region96: #{tpu_custom_call.1} parent=89 // pred_check_branch
          %524 = sbr.rel (%p522) target = $region98
        $region97: #{tpu_custom_call.1} parent=89 // pred_region
          %525 = dma.done [#allocation4], 128
        $region98: #{tpu_custom_call.1} parent=89 // pred_fallthru
          _
        %s526 = sand.u32 %s30, 1
        %s527 = scalar_lea.sflag [#allocation9], %s526
        %s528 = sand.u32 %s97, 1
        %s529 = smul.addr %s528, 128
        %s530 = scalar_lea.vmem [#allocation8], %s529
        // Predicated region
        $region99: #{tpu_custom_call.1} parent=89 // pred_check
          %p531 = pneg %p110
        $region100: #{tpu_custom_call.1} parent=89 // pred_check_branch
          %533 = sbr.rel (%p531) target = $region102
        $region101: #{tpu_custom_call.1} parent=89 // pred_region
          %534 = dma.done %s527, 2048
        $region102: #{tpu_custom_call.1} parent=89 // pred_fallthru
          _
        %s535 = sand.u32 %s30, 1
        %s536 = scalar_lea.sflag [#allocation9], %s535
        %s537 = sand.u32 %s123, 1
        %s538 = smul.addr %s537, 256
        %s539 = scalar_lea.vmem [#allocation10], %s538
        // Predicated region
        $region103: #{tpu_custom_call.1} parent=89 // pred_check
          %p540 = pneg %p136
        $region104: #{tpu_custom_call.1} parent=89 // pred_check_branch
          %542 = sbr.rel (%p540) target = $region106
        $region105: #{tpu_custom_call.1} parent=89 // pred_region
          %543 = dma.done %s536, 4096
        $region106: #{tpu_custom_call.1} parent=89 // pred_fallthru
          _
        %s544 = sand.u32 %s175, 1
        %s545 = sand.u32 %s175, 1
        %s546 = smul.addr %s545, 2
        %s547 = scalar_lea.vmem [#allocation11], %s546
        // Predicated region
        $region107: #{tpu_custom_call.1} parent=89 // pred_check
          %p548 = pneg %p188
        $region108: #{tpu_custom_call.1} parent=89 // pred_check_branch
          %550 = sbr.rel (%p548) target = $region110
        $region109: #{tpu_custom_call.1} parent=89 // pred_region
          _
        $region110: #{tpu_custom_call.1} parent=89 // pred_fallthru
          _
        %s551 = sand.u32 %s30, 1
        %s552 = scalar_lea.sflag [#allocation13], %s551
        %s553 = sand.u32 %s201, 1
        %s554 = smul.addr %s553, 128
        %s555 = scalar_lea.vmem [#allocation12], %s554
        // Predicated region
        $region111: #{tpu_custom_call.1} parent=89 // pred_check
          %p556 = pneg %p214
        $region112: #{tpu_custom_call.1} parent=89 // pred_check_branch
          %558 = sbr.rel (%p556) target = $region114
        $region113: #{tpu_custom_call.1} parent=89 // pred_region
          %559 = dma.done %s552, 2048
        $region114: #{tpu_custom_call.1} parent=89 // pred_fallthru
          _
        %s560 = sand.u32 %s30, 1
        %s561 = scalar_lea.sflag [#allocation13], %s560
        %s562 = sand.u32 %s227, 1
        %s563 = smul.addr %s562, 256
        %s564 = scalar_lea.vmem [#allocation14], %s563
        // Predicated region
        $region115: #{tpu_custom_call.1} parent=89 // pred_check
          %p565 = pneg %p240
        $region116: #{tpu_custom_call.1} parent=89 // pred_check_branch
          %567 = sbr.rel (%p565) target = $region118
        $region117: #{tpu_custom_call.1} parent=89 // pred_region
          %568 = dma.done %s561, 4096
        $region118: #{tpu_custom_call.1} parent=89 // pred_fallthru
          _
        %569 = sfence
        %p570 = pneg %p58
        %p571 = pneg %p55
        %p572 = pneg %p84
        %p573 = pneg %p81
        %s574 = sand.u32 %s30, 1
        %s575 = scalar_lea.sflag [#allocation9], %s574
        %s576 = sand.u32 %s97, 1
        %s577 = smul.addr %s576, 128
        %s578 = scalar_lea.vmem [#allocation8], %s577
        %p579 = pneg %p110
        %p580 = pneg %p107
        %s581 = sand.u32 %s30, 1
        %s582 = scalar_lea.sflag [#allocation9], %s581
        %s583 = sand.u32 %s123, 1
        %s584 = smul.addr %s583, 256
        %s585 = scalar_lea.vmem [#allocation10], %s584
        %p586 = pneg %p136
        %p587 = pneg %p133
        %p588 = scmp.lt.s32.totalorder %s35, 1
        %s589 = scalar_select %p588, %s35, 1
        %s590 = scalar_lea.vmem %s4, %s589
        %p591 = pneg %p162
        %p592 = pneg %p159
        %s593 = sand.u32 %s175, 1
        %s594 = sand.u32 %s175, 1
        %s595 = smul.addr %s594, 2
        %s596 = scalar_lea.vmem [#allocation11], %s595
        %p597 = pneg %p188
        %p598 = pneg %p185
        %s599 = sand.u32 %s30, 1
        %s600 = scalar_lea.sflag [#allocation13], %s599
        %s601 = sand.u32 %s201, 1
        %s602 = smul.addr %s601, 128
        %s603 = scalar_lea.vmem [#allocation12], %s602
        %p604 = pneg %p214
        %p605 = pneg %p211
        %s606 = sand.u32 %s30, 1
        %s607 = scalar_lea.sflag [#allocation13], %s606
        %s608 = sand.u32 %s227, 1
        %s609 = smul.addr %s608, 256
        %s610 = scalar_lea.vmem [#allocation14], %s609
        %p611 = pneg %p240
        %p612 = pneg %p237
        %p613 = pneg %p261
        %p614 = pneg %p258
        %p615 = pneg %p282
        %p616 = pneg %p279
        %p617 = pneg %p308
        %p618 = pneg %p305
        %s619 = smul.u32 16, %s35
        %s620 = smul.u32 16, %s35
        %p621 = scmp.lt.s32.totalorder %s35, 1
        %s622 = scalar_select %p621, %s35, 1
        %s623 = scalar_lea.vmem %s4, %s622
        %p625 = scmp.eq.s32.totalorder %s35, 0
        // Predicated region
        $region119: #{tpu_custom_call.1} parent=89 // pred_check
          %p626 = pneg %p625
        $region120: #{tpu_custom_call.1} parent=89 // pred_check_branch
          %628 = sbr.rel (%p626) target = $region122
        $region121: #{tpu_custom_call.1} parent=89 // pred_region
          %629 = vst [vmem:[#allocation2] sm:$0xff] 0.0
        $region122: #{tpu_custom_call.1} parent=89 // pred_fallthru
          _
        %s630 = sld [smem:[#allocation3]]
        %s631 = sld [smem:[#allocation3 + $0x1]]
        %s632 = sadd.f32 %s630, %s631
        %s633 = ssub.f32 1.0, %s632
        %v634 = vld [vmem:[%s530] sm:$0xff]
        %v635 = vld [vmem:[%s530 + $0x8] sm:$0xff]
        %v636 = vld [vmem:[%s530 + $0x10] sm:$0xff]
        %v637 = vld [vmem:[%s530 + $0x18] sm:$0xff]
        %v638 = vld [vmem:[%s530 + $0x20] sm:$0xff]
        %v639 = vld [vmem:[%s530 + $0x28] sm:$0xff]
        %v640 = vld [vmem:[%s530 + $0x30] sm:$0xff]
        %v641 = vld [vmem:[%s530 + $0x38] sm:$0xff]
        %v642 = vld [vmem:[%s530 + $0x40] sm:$0xff]
        %v643 = vld [vmem:[%s530 + $0x48] sm:$0xff]
        %v644 = vld [vmem:[%s530 + $0x50] sm:$0xff]
        %v645 = vld [vmem:[%s530 + $0x58] sm:$0xff]
        %v646 = vld [vmem:[%s530 + $0x60] sm:$0xff]
        %v647 = vld [vmem:[%s530 + $0x68] sm:$0xff]
        %v648 = vld [vmem:[%s530 + $0x70] sm:$0xff]
        %v649 = vld [vmem:[%s530 + $0x78] sm:$0xff]
        %v650 = vstv %s633
        %v651 = vmul.f32 %v650, %v634
        %v652 = vmul.f32 %v650, %v635
        %v653 = vmul.f32 %v650, %v636
        %v654 = vmul.f32 %v650, %v637
        %v655 = vmul.f32 %v650, %v638
        %v656 = vmul.f32 %v650, %v639
        %v657 = vmul.f32 %v650, %v640
        %v658 = vmul.f32 %v650, %v641
        %v659 = vmul.f32 %v650, %v642
        %v660 = vmul.f32 %v650, %v643
        %v661 = vmul.f32 %v650, %v644
        %v662 = vmul.f32 %v650, %v645
        %v663 = vmul.f32 %v650, %v646
        %v664 = vmul.f32 %v650, %v647
        %v665 = vmul.f32 %v650, %v648
        %v666 = vmul.f32 %v650, %v649
        %v667 = vld [vmem:[%s539] sm:$0xff]
        %v668 = vld [vmem:[%s539 + $0x8] sm:$0xff]
        %v669 = vld [vmem:[%s539 + $0x10] sm:$0xff]
        %v670 = vld [vmem:[%s539 + $0x18] sm:$0xff]
        %v671 = vld [vmem:[%s539 + $0x20] sm:$0xff]
        %v672 = vld [vmem:[%s539 + $0x28] sm:$0xff]
        %v673 = vld [vmem:[%s539 + $0x30] sm:$0xff]
        %v674 = vld [vmem:[%s539 + $0x38] sm:$0xff]
        %v675 = vld [vmem:[%s539 + $0x40] sm:$0xff]
        %v676 = vld [vmem:[%s539 + $0x48] sm:$0xff]
        %v677 = vld [vmem:[%s539 + $0x50] sm:$0xff]
        %v678 = vld [vmem:[%s539 + $0x58] sm:$0xff]
        %v679 = vld [vmem:[%s539 + $0x60] sm:$0xff]
        %v680 = vld [vmem:[%s539 + $0x68] sm:$0xff]
        %v681 = vld [vmem:[%s539 + $0x70] sm:$0xff]
        %v682 = vld [vmem:[%s539 + $0x78] sm:$0xff]
        %v683 = vstv %s630
        %v684 = vmul.f32 %v683, %v667
        %v685 = vmul.f32 %v683, %v668
        %v686 = vmul.f32 %v683, %v669
        %v687 = vmul.f32 %v683, %v670
        %v688 = vmul.f32 %v683, %v671
        %v689 = vmul.f32 %v683, %v672
        %v690 = vmul.f32 %v683, %v673
        %v691 = vmul.f32 %v683, %v674
        %v692 = vmul.f32 %v683, %v675
        %v693 = vmul.f32 %v683, %v676
        %v694 = vmul.f32 %v683, %v677
        %v695 = vmul.f32 %v683, %v678
        %v696 = vmul.f32 %v683, %v679
        %v697 = vmul.f32 %v683, %v680
        %v698 = vmul.f32 %v683, %v681
        %v699 = vmul.f32 %v683, %v682
        %v700 = vadd.f32 %v651, %v684
        %v701 = vadd.f32 %v652, %v685
        %v702 = vadd.f32 %v653, %v686
        %v703 = vadd.f32 %v654, %v687
        %v704 = vadd.f32 %v655, %v688
        %v705 = vadd.f32 %v656, %v689
        %v706 = vadd.f32 %v657, %v690
        %v707 = vadd.f32 %v658, %v691
        %v708 = vadd.f32 %v659, %v692
        %v709 = vadd.f32 %v660, %v693
        %v710 = vadd.f32 %v661, %v694
        %v711 = vadd.f32 %v662, %v695
        %v712 = vadd.f32 %v663, %v696
        %v713 = vadd.f32 %v664, %v697
        %v714 = vadd.f32 %v665, %v698
        %v715 = vadd.f32 %v666, %v699
        %s716 = scalar_lea.vmem %s539, 128 [#allocation10]
        %v717 = vld [vmem:[%s716] sm:$0xff]
        %v718 = vld [vmem:[%s716 + $0x8] sm:$0xff]
        %v719 = vld [vmem:[%s716 + $0x10] sm:$0xff]
        %v720 = vld [vmem:[%s716 + $0x18] sm:$0xff]
        %v721 = vld [vmem:[%s716 + $0x20] sm:$0xff]
        %v722 = vld [vmem:[%s716 + $0x28] sm:$0xff]
        %v723 = vld [vmem:[%s716 + $0x30] sm:$0xff]
        %v724 = vld [vmem:[%s716 + $0x38] sm:$0xff]
        %v725 = vld [vmem:[%s716 + $0x40] sm:$0xff]
        %v726 = vld [vmem:[%s716 + $0x48] sm:$0xff]
        %v727 = vld [vmem:[%s716 + $0x50] sm:$0xff]
        %v728 = vld [vmem:[%s716 + $0x58] sm:$0xff]
        %v729 = vld [vmem:[%s716 + $0x60] sm:$0xff]
        %v730 = vld [vmem:[%s716 + $0x68] sm:$0xff]
        %v731 = vld [vmem:[%s716 + $0x70] sm:$0xff]
        %v732 = vld [vmem:[%s716 + $0x78] sm:$0xff]
        %v733 = vstv %s631
        %v734 = vmul.f32 %v733, %v717
        %v735 = vmul.f32 %v733, %v718
        %v736 = vmul.f32 %v733, %v719
        %v737 = vmul.f32 %v733, %v720
        %v738 = vmul.f32 %v733, %v721
        %v739 = vmul.f32 %v733, %v722
        %v740 = vmul.f32 %v733, %v723
        %v741 = vmul.f32 %v733, %v724
        %v742 = vmul.f32 %v733, %v725
        %v743 = vmul.f32 %v733, %v726
        %v744 = vmul.f32 %v733, %v727
        %v745 = vmul.f32 %v733, %v728
        %v746 = vmul.f32 %v733, %v729
        %v747 = vmul.f32 %v733, %v730
        %v748 = vmul.f32 %v733, %v731
        %v749 = vmul.f32 %v733, %v732
        %v750 = vadd.f32 %v700, %v734
        %v751 = vadd.f32 %v701, %v735
        %v752 = vadd.f32 %v702, %v736
        %v753 = vadd.f32 %v703, %v737
        %v754 = vadd.f32 %v704, %v738
        %v755 = vadd.f32 %v705, %v739
        %v756 = vadd.f32 %v706, %v740
        %v757 = vadd.f32 %v707, %v741
        %v758 = vadd.f32 %v708, %v742
        %v759 = vadd.f32 %v709, %v743
        %v760 = vadd.f32 %v710, %v744
        %v761 = vadd.f32 %v711, %v745
        %v762 = vadd.f32 %v712, %v746
        %v763 = vadd.f32 %v713, %v747
        %v764 = vadd.f32 %v714, %v748
        %v765 = vadd.f32 %v715, %v749
        %v766 = vld [vmem:[%s623] sm:$0x1]
        %v767 = vmul.f32 %v650, %v766
        %v768 = vld [vmem:[%s547] sm:$0x1]
        %v769 = vmul.f32 %v683, %v768
        %v770 = vadd.f32 %v767, %v769
        %s771 = scalar_lea.vmem %s547, 1 [#allocation11]
        %v772 = vld [vmem:[%s771] sm:$0x1]
        %v773 = vmul.f32 %v733, %v772
        %v774 = vadd.f32 %v770, %v773
        %v775 = vld [vmem:[#allocation7] sm:$0xff]
        %v776 = vpack.c.bf16 %v775, %v775
        %v777 = vpack.c.bf16 %v751, %v750
        %v778 = vpack.c.bf16 %v753, %v752
        %v779 = vpack.c.bf16 %v755, %v754
        %v780 = vpack.c.bf16 %v757, %v756
        %v781 = vpack.c.bf16 %v759, %v758
        %v782 = vpack.c.bf16 %v761, %v760
        %v783 = vpack.c.bf16 %v763, %v762
        %v784 = vpack.c.bf16 %v765, %v764
        %v786 = vlaneseq
        %v787 = vshrl.u32 %v786, 7
        %v788 = vsub.s32 0, %v787
        %v789 = vrot.slane %v774, %v788
        %791 = vmatprep.subr.bf16.mxu0 0
        %792 = vmatpush1.bf16.xpose.msra.mxu0 %v777
        %793 = vmatprep.subr.bf16.mxu0 0
        %794 = vmatpush1.bf16.xpose.msra.mxu0 %v778
        %795 = vmatprep.subr.bf16.mxu0 0
        %796 = vmatpush1.bf16.xpose.msra.mxu0 %v779
        %797 = vmatprep.subr.bf16.mxu0 0
        %798 = vmatpush1.bf16.xpose.msra.mxu0 %v780
        %799 = vmatprep.subr.bf16.mxu0 0
        %800 = vmatpush1.bf16.xpose.msra.mxu0 %v781
        %801 = vmatprep.subr.bf16.mxu0 0
        %802 = vmatpush1.bf16.xpose.msra.mxu0 %v782
        %803 = vmatprep.subr.bf16.mxu0 0
        %804 = vmatpush1.bf16.xpose.msra.mxu0 %v783
        %805 = vmatprep.subr.bf16.mxu0 0
        %806 = vmatpush1.bf16.xpose.msra.mxu0 %v784
        %807 = vmatprep.subr.bf16.mxu0 0
        %808 = vmatpush1.bf16.xpose.msra.mxu0 0
        %809 = vmatprep.subr.bf16.mxu0 0
        %810 = vmatpush1.bf16.xpose.msra.mxu0 0
        %811 = vmatprep.subr.bf16.mxu0 0
        %812 = vmatpush1.bf16.xpose.msra.mxu0 0
        %813 = vmatprep.subr.bf16.mxu0 0
        %814 = vmatpush1.bf16.xpose.msra.mxu0 0
        %815 = vmatprep.subr.bf16.mxu0 0
        %816 = vmatpush1.bf16.xpose.msra.mxu0 0
        %817 = vmatprep.subr.bf16.mxu0 0
        %818 = vmatpush1.bf16.xpose.msra.mxu0 0
        %819 = vmatprep.subr.bf16.mxu0 0
        %820 = vmatpush1.bf16.xpose.msra.mxu0 0
        %821 = vmatprep.subr.bf16.mxu0 0
        %822 = vmatpush1.bf16.xpose.msra.mxu0 0
        %823 = vmatprep.mubr.bf16.mxu0 0
        %824 = vmatmul.mubr.bf16.gmra.mrb[0].mxu0 %v776
        %v825 = vpop.f32.mrb[0].mxu0
        %v826 = vadd.f32 %v789, %v825
        %v827 = vpop.f32.mrb[0].mxu0
        %v828 = vpop.f32.mrb[0].mxu0
        %v829 = vpop.f32.mrb[0].mxu0
        %830 = vdwg.mxu0
        %v831 = vmax.f32 %v826, 0.0
        %v832 = vld [vmem:[%s555] sm:$0xff]
        %v833 = vld [vmem:[%s555 + $0x8] sm:$0xff]
        %v834 = vld [vmem:[%s555 + $0x10] sm:$0xff]
        %v835 = vld [vmem:[%s555 + $0x18] sm:$0xff]
        %v836 = vld [vmem:[%s555 + $0x20] sm:$0xff]
        %v837 = vld [vmem:[%s555 + $0x28] sm:$0xff]
        %v838 = vld [vmem:[%s555 + $0x30] sm:$0xff]
        %v839 = vld [vmem:[%s555 + $0x38] sm:$0xff]
        %v840 = vld [vmem:[%s555 + $0x40] sm:$0xff]
        %v841 = vld [vmem:[%s555 + $0x48] sm:$0xff]
        %v842 = vld [vmem:[%s555 + $0x50] sm:$0xff]
        %v843 = vld [vmem:[%s555 + $0x58] sm:$0xff]
        %v844 = vld [vmem:[%s555 + $0x60] sm:$0xff]
        %v845 = vld [vmem:[%s555 + $0x68] sm:$0xff]
        %v846 = vld [vmem:[%s555 + $0x70] sm:$0xff]
        %v847 = vld [vmem:[%s555 + $0x78] sm:$0xff]
        %v848 = vmul.f32 %v650, %v832
        %v849 = vmul.f32 %v650, %v833
        %v850 = vmul.f32 %v650, %v834
        %v851 = vmul.f32 %v650, %v835
        %v852 = vmul.f32 %v650, %v836
        %v853 = vmul.f32 %v650, %v837
        %v854 = vmul.f32 %v650, %v838
        %v855 = vmul.f32 %v650, %v839
        %v856 = vmul.f32 %v650, %v840
        %v857 = vmul.f32 %v650, %v841
        %v858 = vmul.f32 %v650, %v842
        %v859 = vmul.f32 %v650, %v843
        %v860 = vmul.f32 %v650, %v844
        %v861 = vmul.f32 %v650, %v845
        %v862 = vmul.f32 %v650, %v846
        %v863 = vmul.f32 %v650, %v847
        %v864 = vld [vmem:[%s564] sm:$0xff]
        %v865 = vld [vmem:[%s564 + $0x8] sm:$0xff]
        %v866 = vld [vmem:[%s564 + $0x10] sm:$0xff]
        %v867 = vld [vmem:[%s564 + $0x18] sm:$0xff]
        %v868 = vld [vmem:[%s564 + $0x20] sm:$0xff]
        %v869 = vld [vmem:[%s564 + $0x28] sm:$0xff]
        %v870 = vld [vmem:[%s564 + $0x30] sm:$0xff]
        %v871 = vld [vmem:[%s564 + $0x38] sm:$0xff]
        %v872 = vld [vmem:[%s564 + $0x40] sm:$0xff]
        %v873 = vld [vmem:[%s564 + $0x48] sm:$0xff]
        %v874 = vld [vmem:[%s564 + $0x50] sm:$0xff]
        %v875 = vld [vmem:[%s564 + $0x58] sm:$0xff]
        %v876 = vld [vmem:[%s564 + $0x60] sm:$0xff]
        %v877 = vld [vmem:[%s564 + $0x68] sm:$0xff]
        %v878 = vld [vmem:[%s564 + $0x70] sm:$0xff]
        %v879 = vld [vmem:[%s564 + $0x78] sm:$0xff]
        %v880 = vmul.f32 %v683, %v864
        %v881 = vmul.f32 %v683, %v865
        %v882 = vmul.f32 %v683, %v866
        %v883 = vmul.f32 %v683, %v867
        %v884 = vmul.f32 %v683, %v868
        %v885 = vmul.f32 %v683, %v869
        %v886 = vmul.f32 %v683, %v870
        %v887 = vmul.f32 %v683, %v871
        %v888 = vmul.f32 %v683, %v872
        %v889 = vmul.f32 %v683, %v873
        %v890 = vmul.f32 %v683, %v874
        %v891 = vmul.f32 %v683, %v875
        %v892 = vmul.f32 %v683, %v876
        %v893 = vmul.f32 %v683, %v877
        %v894 = vmul.f32 %v683, %v878
        %v895 = vmul.f32 %v683, %v879
        %v896 = vadd.f32 %v848, %v880
        %v897 = vadd.f32 %v849, %v881
        %v898 = vadd.f32 %v850, %v882
        %v899 = vadd.f32 %v851, %v883
        %v900 = vadd.f32 %v852, %v884
        %v901 = vadd.f32 %v853, %v885
        %v902 = vadd.f32 %v854, %v886
        %v903 = vadd.f32 %v855, %v887
        %v904 = vadd.f32 %v856, %v888
        %v905 = vadd.f32 %v857, %v889
        %v906 = vadd.f32 %v858, %v890
        %v907 = vadd.f32 %v859, %v891
        %v908 = vadd.f32 %v860, %v892
        %v909 = vadd.f32 %v861, %v893
        %v910 = vadd.f32 %v862, %v894
        %v911 = vadd.f32 %v863, %v895
        %s912 = scalar_lea.vmem %s564, 128 [#allocation14]
        %v913 = vld [vmem:[%s912] sm:$0xff]
        %v914 = vld [vmem:[%s912 + $0x8] sm:$0xff]
        %v915 = vld [vmem:[%s912 + $0x10] sm:$0xff]
        %v916 = vld [vmem:[%s912 + $0x18] sm:$0xff]
        %v917 = vld [vmem:[%s912 + $0x20] sm:$0xff]
        %v918 = vld [vmem:[%s912 + $0x28] sm:$0xff]
        %v919 = vld [vmem:[%s912 + $0x30] sm:$0xff]
        %v920 = vld [vmem:[%s912 + $0x38] sm:$0xff]
        %v921 = vld [vmem:[%s912 + $0x40] sm:$0xff]
        %v922 = vld [vmem:[%s912 + $0x48] sm:$0xff]
        %v923 = vld [vmem:[%s912 + $0x50] sm:$0xff]
        %v924 = vld [vmem:[%s912 + $0x58] sm:$0xff]
        %v925 = vld [vmem:[%s912 + $0x60] sm:$0xff]
        %v926 = vld [vmem:[%s912 + $0x68] sm:$0xff]
        %v927 = vld [vmem:[%s912 + $0x70] sm:$0xff]
        %v928 = vld [vmem:[%s912 + $0x78] sm:$0xff]
        %v929 = vmul.f32 %v733, %v913
        %v930 = vmul.f32 %v733, %v914
        %v931 = vmul.f32 %v733, %v915
        %v932 = vmul.f32 %v733, %v916
        %v933 = vmul.f32 %v733, %v917
        %v934 = vmul.f32 %v733, %v918
        %v935 = vmul.f32 %v733, %v919
        %v936 = vmul.f32 %v733, %v920
        %v937 = vmul.f32 %v733, %v921
        %v938 = vmul.f32 %v733, %v922
        %v939 = vmul.f32 %v733, %v923
        %v940 = vmul.f32 %v733, %v924
        %v941 = vmul.f32 %v733, %v925
        %v942 = vmul.f32 %v733, %v926
        %v943 = vmul.f32 %v733, %v927
        %v944 = vmul.f32 %v733, %v928
        %v945 = vadd.f32 %v896, %v929
        %v946 = vadd.f32 %v897, %v930
        %v947 = vadd.f32 %v898, %v931
        %v948 = vadd.f32 %v899, %v932
        %v949 = vadd.f32 %v900, %v933
        %v950 = vadd.f32 %v901, %v934
        %v951 = vadd.f32 %v902, %v935
        %v952 = vadd.f32 %v903, %v936
        %v953 = vadd.f32 %v904, %v937
        %v954 = vadd.f32 %v905, %v938
        %v955 = vadd.f32 %v906, %v939
        %v956 = vadd.f32 %v907, %v940
        %v957 = vadd.f32 %v908, %v941
        %v958 = vadd.f32 %v909, %v942
        %v959 = vadd.f32 %v910, %v943
        %v960 = vadd.f32 %v911, %v944
        %v961 = vld [vmem:[#allocation2] sm:$0xff]
        %v962 = vpack.c.bf16 %v831, %v831
        %v963 = vpack.c.bf16 %v946, %v945
        %v964 = vpack.c.bf16 %v948, %v947
        %v965 = vpack.c.bf16 %v950, %v949
        %v966 = vpack.c.bf16 %v952, %v951
        %v967 = vpack.c.bf16 %v954, %v953
        %v968 = vpack.c.bf16 %v956, %v955
        %v969 = vpack.c.bf16 %v958, %v957
        %v970 = vpack.c.bf16 %v960, %v959
        %971 = vmatprep.subr.bf16.mxu0 0
        %972 = vmatpush1.bf16.xpose.msra.mxu0 %v963
        %973 = vmatprep.subr.bf16.mxu0 0
        %974 = vmatpush1.bf16.xpose.msra.mxu0 %v964
        %975 = vmatprep.subr.bf16.mxu0 0
        %976 = vmatpush1.bf16.xpose.msra.mxu0 %v965
        %977 = vmatprep.subr.bf16.mxu0 0
        %978 = vmatpush1.bf16.xpose.msra.mxu0 %v966
        %979 = vmatprep.subr.bf16.mxu0 0
        %980 = vmatpush1.bf16.xpose.msra.mxu0 %v967
        %981 = vmatprep.subr.bf16.mxu0 0
        %982 = vmatpush1.bf16.xpose.msra.mxu0 %v968
        %983 = vmatprep.subr.bf16.mxu0 0
        %984 = vmatpush1.bf16.xpose.msra.mxu0 %v969
        %985 = vmatprep.subr.bf16.mxu0 0
        %986 = vmatpush1.bf16.xpose.msra.mxu0 %v970
        %987 = vmatprep.subr.bf16.mxu0 0
        %988 = vmatpush1.bf16.xpose.msra.mxu0 0
        %989 = vmatprep.subr.bf16.mxu0 0
        %990 = vmatpush1.bf16.xpose.msra.mxu0 0
        %991 = vmatprep.subr.bf16.mxu0 0
        %992 = vmatpush1.bf16.xpose.msra.mxu0 0
        %993 = vmatprep.subr.bf16.mxu0 0
        %994 = vmatpush1.bf16.xpose.msra.mxu0 0
        %995 = vmatprep.subr.bf16.mxu0 0
        %996 = vmatpush1.bf16.xpose.msra.mxu0 0
        %997 = vmatprep.subr.bf16.mxu0 0
        %998 = vmatpush1.bf16.xpose.msra.mxu0 0
        %999 = vmatprep.subr.bf16.mxu0 0
        %1000 = vmatpush1.bf16.xpose.msra.mxu0 0
        %1001 = vmatprep.subr.bf16.mxu0 0
        %1002 = vmatpush1.bf16.xpose.msra.mxu0 0
        %1003 = vmatprep.mubr.bf16.mxu0 0
        %1004 = vmatmul.mubr.bf16.gmra.mrb[0].mxu0 %v962
        %v1005 = vpop.f32.mrb[0].mxu0
        %v1006 = vadd.f32 0.0, %v1005
        %v1007 = vpop.f32.mrb[0].mxu0
        %v1008 = vpop.f32.mrb[0].mxu0
        %v1009 = vpop.f32.mrb[0].mxu0
        %1010 = vdwg.mxu0
        %v1011 = vadd.f32 %v961, %v1006
        %1012 = vst [vmem:[#allocation2] sm:$0xff] %v1011
        %p1013 = scmp.eq.s32.totalorder %s35, 1
        // Predicated region
        $region123: #{tpu_custom_call.1} parent=89 // pred_check
          %p1014 = pneg %p1013
        $region124: #{tpu_custom_call.1} parent=89 // pred_check_branch
          %1016 = sbr.rel (%p1014) target = $region126
        $region125: #{tpu_custom_call.1} parent=89 // pred_region
          %v1017 = vld [vmem:[%s8] sm:$0x1]
          %v1018 = vmul.f32 %v650, %v1017
          %s1019 = sld [smem:[#allocation3]]
          %v1020 = vld [vmem:[%s9] sm:$0x1]
          %v1021 = vstv %s1019
          %v1022 = vmul.f32 %v1021, %v1020
          %v1023 = vadd.f32 %v1018, %v1022
          %s1024 = sld [smem:[#allocation3 + $0x1]]
          %s1025 = scalar_lea.vmem %s9, 1
          %v1026 = vld [vmem:[%s1025] sm:$0x1]
          %v1027 = vstv %s1024
          %v1028 = vmul.f32 %v1027, %v1026
          %v1029 = vadd.f32 %v1023, %v1028
          %v1030 = vld [vmem:[#allocation2] sm:$0xff]
          %v1032 = vlaneseq
          %v1033 = vshrl.u32 %v1032, 7
          %v1034 = vsub.s32 0, %v1033
          %v1035 = vrot.slane %v1029, %v1034
          %v1037 = vadd.f32 %v1030, %v1035
          %1038 = vst [vmem:[#allocation15] sm:$0xff] %v1037
        $region126: #{tpu_custom_call.1} parent=89 // pred_fallthru
          _
        // Predicated region
        $region127: #{tpu_custom_call.1} parent=89 // pred_check
          %p1039 = pneg %p305
        $region128: #{tpu_custom_call.1} parent=89 // pred_check_branch
          %1041 = sbr.rel (%p1039) target = $region130
        $region129: #{tpu_custom_call.1} parent=89 // pred_region
          %s1043 = ssub.s32 128, 128
          %1044 = vsyncadd [#allocation5], %s1043
          %s1045 = smul.addr %s34, 128
          %s1046 = scalar_lea.hbm %s10, %s1045
          %s1048 = sshll.u32 [#allocation15], 4
          %s1049 = int_to_ptr.vmem [resolvable:$true] %s1048
          %1051 = dma.vmem_to_hbm [thread:$0]  %s1049, 128, %s1046, [#allocation5]
        $region130: #{tpu_custom_call.1} parent=89 // pred_fallthru
          _
        // Predicated region
        $region131: #{tpu_custom_call.1} parent=89 // pred_check
          %p1052 = pneg %p305
        $region132: #{tpu_custom_call.1} parent=89 // pred_check_branch
          %1054 = sbr.rel (%p1052) target = $region134
        $region133: #{tpu_custom_call.1} parent=89 // pred_region
          %1055 = dma.done [#allocation5], 128
        $region134: #{tpu_custom_call.1} parent=89 // pred_fallthru
          _
      $region90: #{tpu_custom_call.1} parent=5 // pred_fallthru
        _
      %p1056 = scmp.le.s32.totalorder 2, %s25
      // Predicated region
      $region135: #{tpu_custom_call.1} parent=5 // pred_check
        %p1057 = pneg %p1056
      $region136: #{tpu_custom_call.1} parent=5 // pred_check_branch
        %1059 = sbr.rel (%p1057) target = $region138
      $region137: #{tpu_custom_call.1} parent=5 // pred_region
        %s1060 = ssub.s32 %s25, 2
      $region138: #{tpu_custom_call.1} parent=5 // pred_fallthru
        _
    $region6: #{tpu_custom_call.1} parent=1 // loop_footer
      %s29 = sadd.s32 1, %s25
    $region7: #{tpu_custom_call.1} parent=1 // loop_footer_branch
      %24 = sbr.rel target = $region3
    $region8: #{tpu_custom_call.1} parent=1 // loop_exit
      _
    %1061 = vsyncpa [#allocation4], 1
    %s1062 = scalar_lea.sflag [#allocation4], 1
    %1063 = vsyncpa %s1062, 1
    %1064 = vsyncpa [#allocation9], 1
    %s1065 = scalar_lea.sflag [#allocation9], 1
    %1066 = vsyncpa %s1065, 1
    %1067 = vsyncpa [#allocation13], 1
    %s1068 = scalar_lea.sflag [#allocation13], 1
    %1069 = vsyncpa %s1068, 1
    %1070 = vsyncpa [#allocation5], 1
    %s1071 = scalar_lea.sflag [#allocation5], 1
    %1072 = vsyncpa %s1071, 1
    %1073 = vsyncpa [#allocation6], 1
    %s1074 = scalar_lea.sflag [#allocation6], 1
    %1075 = vsyncpa %s1074, 1

</llo_original>
